<compile_context>
chip_gen: v6e
topology: v6e:2x2x1
jax: 0.10.0
libtpu: 0.0.40
codegen_flags: <defaults>
</compile_context>

<pallas_src>
import functools

import jax
import jax.numpy as jnp
from jax import lax
from jax.experimental import pallas as pl
from jax.experimental.pallas import tpu as pltpu


def _btnn_kernel(x_ref, pr_ref, nr_ref, o_ref, acc_ref):
    k = pl.program_id(2)

    @pl.when(k == 0)
    def _():
        acc_ref[...] = jnp.zeros_like(acc_ref)

    # Binarize weight tiles in-kernel (fused; cheap VPU compares hidden under
    # the MXU). qdiff in {-1, 0, +1}; zero-padded weight rows/cols binarize to 0.
    qdiff = ((pr_ref[...] > 0.0).astype(jnp.float32)
             - (nr_ref[...] > 0.0).astype(jnp.float32))

    # yr[m, n] += sum_k x[m, k] * qdiff[n, k]   (F.linear contracts last dims;
    # MXU handles the "both-last-dims" contraction natively — no XLU transpose,
    # no wrapper-side weight transpose / extra HBM round-trip).
    acc_ref[...] += lax.dot_general(
        x_ref[...], qdiff,
        dimension_numbers=(((1,), (1,)), ((), ())),
        preferred_element_type=jnp.float32)

    @pl.when(k == pl.num_programs(2) - 1)
    def _():
        # Output binarization fused into the epilogue (lane-dense f32 store).
        o_ref[...] = (acc_ref[...] > 0.0).astype(o_ref.dtype)


def _round_up(v, m):
    return ((v + m - 1) // m) * m


def _pad2d(a, rows, cols):
    r, c = a.shape
    if r == rows and c == cols:
        return a
    return jnp.pad(a, ((0, rows - r), (0, cols - c)))


@functools.partial(jax.jit, static_argnames=("tm", "tn", "tk"))
def btnn_forward(x, pr_weight, nr_weight, *, tm=256, tn=512, tk=512):
    """x: (batch, in_features); pr_weight, nr_weight: (out_features, in_features)."""
    batch, in_features = x.shape
    out_features = pr_weight.shape[0]

    x = x.astype(jnp.float32)
    pr = pr_weight.astype(jnp.float32)
    nr = nr_weight.astype(jnp.float32)

    # (8, 128)-aligned f32 tiles, clamped to the (padded) problem size so small
    # problems use a single block and big problems use large, lane-dense tiles.
    tm = min(tm, _round_up(batch, 8))
    tn = min(tn, _round_up(out_features, 128))
    tk = min(tk, _round_up(in_features, 128))

    mp = _round_up(batch, tm)
    np_ = _round_up(out_features, tn)
    kp = _round_up(in_features, tk)

    # Padding is a no-op (skipped) when shapes are already tile-aligned.
    x_p = _pad2d(x, mp, kp)
    pr_p = _pad2d(pr, np_, kp)
    nr_p = _pad2d(nr, np_, kp)

    grid = (mp // tm, np_ // tn, kp // tk)

    cost = pl.CostEstimate(
        flops=2 * mp * np_ * kp + 3 * np_ * kp + mp * np_,
        transcendentals=0,
        bytes_accessed=4 * (mp * kp + 2 * np_ * kp + mp * np_),
    )

    out_p = pl.pallas_call(
        _btnn_kernel,
        out_shape=jax.ShapeDtypeStruct((mp, np_), jnp.float32),
        grid_spec=pltpu.PrefetchScalarGridSpec(
            num_scalar_prefetch=0,
            grid=grid,
            in_specs=[
                pl.BlockSpec((tm, tk), lambda i, j, k: (i, k)),   # x
                pl.BlockSpec((tn, tk), lambda i, j, k: (j, k)),   # pr weight
                pl.BlockSpec((tn, tk), lambda i, j, k: (j, k)),   # nr weight
            ],
            out_specs=pl.BlockSpec((tm, tn), lambda i, j, k: (i, j)),
            scratch_shapes=[pltpu.VMEM((tm, tn), jnp.float32)],
        ),
        compiler_params=pltpu.CompilerParams(
            dimension_semantics=("parallel", "parallel", "arbitrary"),
        ),
        cost_estimate=cost,
    )(x_p, pr_p, nr_p)

    if mp == batch and np_ == out_features:
        return out_p
    return out_p[:batch, :out_features]


if __name__ == "__main__":
    key = jax.random.PRNGKey(0)
    kx, kp, kn = jax.random.split(key, 3)

    # Small shapes consistent with btnnLayer(in_features, out_features).
    batch, in_features, out_features = 2, 32, 16

    x = jax.random.normal(kx, (batch, in_features), dtype=jnp.float32)
    # Mirror torch.nn.init.uniform_(weight, -1, 1).
    pr_weight = jax.random.uniform(
        kp, (out_features, in_features), minval=-1.0, maxval=1.0, dtype=jnp.float32)
    nr_weight = jax.random.uniform(
        kn, (out_features, in_features), minval=-1.0, maxval=1.0, dtype=jnp.float32)

    out = btnn_forward(x, pr_weight, nr_weight)
    jax.block_until_ready(out)

    # Pure-JAX reference (value semantics of the torch forward).
    qpr = (pr_weight > 0).astype(jnp.float32)
    qnr = (nr_weight > 0).astype(jnp.float32)
    yr = x @ (qpr - qnr).T
    expected = (yr > 0).astype(jnp.float32)

    assert out.shape == (batch, out_features), out.shape
    assert jnp.array_equal(out, expected), (out, expected)

    # Also exercise a larger, tile-aligned shape to cover the multi-block path.
    bx, bp, bn = jax.random.split(jax.random.PRNGKey(1), 3)
    B2, K2, N2 = 512, 1024, 1024
    x2 = jax.random.normal(bx, (B2, K2), dtype=jnp.float32)
    pr2 = jax.random.uniform(bp, (N2, K2), minval=-1.0, maxval=1.0, dtype=jnp.float32)
    nr2 = jax.random.uniform(bn, (N2, K2), minval=-1.0, maxval=1.0, dtype=jnp.float32)
    out2 = btnn_forward(x2, pr2, nr2)
    jax.block_until_ready(out2)
    exp2 = ((x2 @ ((pr2 > 0).astype(jnp.float32) - (nr2 > 0).astype(jnp.float32)).T)
            > 0).astype(jnp.float32)
    assert jnp.array_equal(out2, exp2)

    print("KERNEL_OK")
</pallas_src>

<mosaic_0001>
module attributes {stable_mosaic.version = 11 : i64} {
  func.func @_btnn_kernel(%arg0: i32, %arg1: i32, %arg2: i32, %arg3: memref<8x128xf32, #tpu.memory_space<vmem>>, %arg4: memref<128x128xf32, #tpu.memory_space<vmem>>, %arg5: memref<128x128xf32, #tpu.memory_space<vmem>>, %arg6: memref<8x128xf32, #tpu.memory_space<vmem>>, %arg7: memref<8x128xf32, #tpu.memory_space<vmem>>) attributes {dimension_semantics = [#tpu.dimension_semantics<parallel>, #tpu.dimension_semantics<parallel>, #tpu.dimension_semantics<arbitrary>], iteration_bounds = array<i64: 1, 1, 1>, scalar_prefetch = 0 : i64, scratch_operands = 1 : i64, tpu.core_type = #tpu.core_type<tc>, window_params = [{transform_indices = @transform_0, window_bounds = array<i64: 8, 128>}, {transform_indices = @transform_1, window_bounds = array<i64: 128, 128>}, {transform_indices = @transform_2, window_bounds = array<i64: 128, 128>}, {transform_indices = @transform_3, window_bounds = array<i64: 8, 128>}]} {
    %c0_i32 = arith.constant 0 : i32
    %0 = arith.cmpi eq, %arg2, %c0_i32 : i32
    %1 = arith.extui %0 : i1 to i32
    %c0_i32_0 = arith.constant 0 : i32
    %2 = arith.cmpi ne, %1, %c0_i32_0 : i32
    scf.if %2 {
      %cst_14 = arith.constant 0.000000e+00 : f32
      %22 = vector.broadcast %cst_14 : f32 to vector<8x128xf32>
      %c0_15 = arith.constant 0 : index
      %c0_16 = arith.constant 0 : index
      %23 = vector.load %arg7[%c0_15, %c0_16] : memref<8x128xf32, #tpu.memory_space<vmem>>, vector<8x128xf32>
      tpu.vector_store %arg7[%c0_15, %c0_16], %22 {strides = array<i32>} : memref<8x128xf32, #tpu.memory_space<vmem>>, vector<8x128xf32>,
    } else {
    }
    %c0 = arith.constant 0 : index
    %c0_1 = arith.constant 0 : index
    %3 = vector.load %arg4[%c0, %c0_1] : memref<128x128xf32, #tpu.memory_space<vmem>>, vector<128x128xf32>
    %cst = arith.constant 0.000000e+00 : f32
    %4 = vector.broadcast %cst : f32 to vector<128x128xf32>
    %5 = arith.cmpf ogt, %3, %4 : vector<128x128xf32>
    %6 = arith.extui %5 : vector<128x128xi1> to vector<128x128xi32>
    %7 = arith.sitofp %6 : vector<128x128xi32> to vector<128x128xf32>
    %c0_2 = arith.constant 0 : index
    %c0_3 = arith.constant 0 : index
    %8 = vector.load %arg5[%c0_2, %c0_3] : memref<128x128xf32, #tpu.memory_space<vmem>>, vector<128x128xf32>
    %cst_4 = arith.constant 0.000000e+00 : f32
    %9 = vector.broadcast %cst_4 : f32 to vector<128x128xf32>
    %10 = arith.cmpf ogt, %8, %9 : vector<128x128xf32>
    %11 = arith.extui %10 : vector<128x128xi1> to vector<128x128xi32>
    %12 = arith.sitofp %11 : vector<128x128xi32> to vector<128x128xf32>
    %13 = arith.subf %7, %12 : vector<128x128xf32>
    %c0_5 = arith.constant 0 : index
    %c0_6 = arith.constant 0 : index
    %14 = vector.load %arg7[%c0_5, %c0_6] : memref<8x128xf32, #tpu.memory_space<vmem>>, vector<8x128xf32>
    %c0_7 = arith.constant 0 : index
    %c0_8 = arith.constant 0 : index
    %15 = vector.load %arg3[%c0_7, %c0_8] : memref<8x128xf32, #tpu.memory_space<vmem>>, vector<8x128xf32>
    %cst_9 = arith.constant dense<0.000000e+00> : vector<8x128xf32>
    %16 = tpu.matmul %15, %13, %cst_9 {dimension_numbers = #tpu.dot_dimension_numbers<[1], [1], [0], [0], [0, 0, 1, 0], [], []>} : vector<8x128xf32>, vector<128x128xf32>, vector<8x128xf32> -> vector<8x128xf32>
    %17 = arith.addf %14, %16 : vector<8x128xf32>
    %c0_10 = arith.constant 0 : index
    %c0_11 = arith.constant 0 : index
    %18 = vector.load %arg7[%c0_10, %c0_11] : memref<8x128xf32, #tpu.memory_space<vmem>>, vector<8x128xf32>
    tpu.vector_store %arg7[%c0_10, %c0_11], %17 {strides = array<i32>} : memref<8x128xf32, #tpu.memory_space<vmem>>, vector<8x128xf32>,
    %c0_i32_12 = arith.constant 0 : i32
    %19 = arith.cmpi eq, %arg2, %c0_i32_12 : i32
    %20 = arith.extui %19 : i1 to i32
    %c0_i32_13 = arith.constant 0 : i32
    %21 = arith.cmpi ne, %20, %c0_i32_13 : i32
    scf.if %21 {
      %c0_14 = arith.constant 0 : index
      %c0_15 = arith.constant 0 : index
      %22 = vector.load %arg7[%c0_14, %c0_15] : memref<8x128xf32, #tpu.memory_space<vmem>>, vector<8x128xf32>
      %cst_16 = arith.constant 0.000000e+00 : f32
      %23 = vector.broadcast %cst_16 : f32 to vector<8x128xf32>
      %24 = arith.cmpf ogt, %22, %23 : vector<8x128xf32>
      %25 = arith.extui %24 : vector<8x128xi1> to vector<8x128xi32>
      %26 = arith.sitofp %25 : vector<8x128xi32> to vector<8x128xf32>
      %c0_17 = arith.constant 0 : index
      %c0_18 = arith.constant 0 : index
      %27 = vector.load %arg6[%c0_17, %c0_18] : memref<8x128xf32, #tpu.memory_space<vmem>>, vector<8x128xf32>
      tpu.vector_store %arg6[%c0_17, %c0_18], %26 {strides = array<i32>} : memref<8x128xf32, #tpu.memory_space<vmem>>, vector<8x128xf32>,
    } else {
    }
    return
  }
  func.func @transform_0(%arg0: i32, %arg1: i32, %arg2: i32) -> (i32, i32) {
    %c0_i32 = arith.constant 0 : i32
    return %arg0, %arg2 : i32, i32
  }
  func.func @transform_1(%arg0: i32, %arg1: i32, %arg2: i32) -> (i32, i32) {
    %c0_i32 = arith.constant 0 : i32
    return %arg1, %arg2 : i32, i32
  }
  func.func @transform_2(%arg0: i32, %arg1: i32, %arg2: i32) -> (i32, i32) {
    %c0_i32 = arith.constant 0 : i32
    return %arg1, %arg2 : i32, i32
  }
  func.func @transform_3(%arg0: i32, %arg1: i32, %arg2: i32) -> (i32, i32) {
    %c0_i32 = arith.constant 0 : i32
    return %arg0, %arg1 : i32, i32
  }
}

</mosaic_0001>

<llo_original>
// kernel: btnn_forward.1
$region0: #{btnn_forward.1}
  #allocation0 [shape = 'u32[]', space=smem, size = 0x4, offset = 0x4, fixed_abs, tag = 'smem constant byte address 0x4 - core index']
  #allocation1 [shape = 'u32[144,128]{1,0:T(1,128)}', space=vmem, size = 0x12000, scoped, tag = 'internal scratch']
  #allocation2 [shape = 'f32[8,128]{1,0:T(8,128)}', space=vmem, size = 0x1000, scoped, tag = 'scratch operand']
  %s0 = inlined_call_operand.vmem [shape: f32[8,128], index: 0, kind: input, shape index: {}]
  %s1 = inlined_call_operand.vmem [shape: f32[128,128], index: 1, kind: input, shape index: {}]
  %s2 = inlined_call_operand.vmem [shape: f32[128,128], index: 2, kind: input, shape index: {}]
  %s3 = inlined_call_operand.vmem [shape: f32[8,128], index: 3, kind: output, shape index: {}]
  %s4 = sld [smem:[#allocation0]]
  $region30: #{btnn_forward.1} parent=0
    _
  %s6 = ssub.s32 1, %s4
  %s7 = scalar_select 0, %s6, %s4
  // Predicated region
  $region2: #{btnn_forward.1} parent=0 // pred_check
    _
  $region3: #{btnn_forward.1} parent=0 // pred_check_branch
    %9 = sbr.rel (0) target = $region5
  $region4: #{btnn_forward.1} parent=0 // pred_region
    _
  $region5: #{btnn_forward.1} parent=0 // pred_fallthru
    _
  // Predicated region
  $region6: #{btnn_forward.1} parent=0 // pred_check
    _
  $region7: #{btnn_forward.1} parent=0 // pred_check_branch
    %11 = sbr.rel (0) target = $region9
  $region8: #{btnn_forward.1} parent=0 // pred_region
    _
  $region9: #{btnn_forward.1} parent=0 // pred_fallthru
    _
  // Predicated region
  $region10: #{btnn_forward.1} parent=0 // pred_check
    _
  $region11: #{btnn_forward.1} parent=0 // pred_check_branch
    %13 = sbr.rel (0) target = $region13
  $region12: #{btnn_forward.1} parent=0 // pred_region
    _
  $region13: #{btnn_forward.1} parent=0 // pred_fallthru
    _
  %p14 = scmp.eq.s32.totalorder 0, 0
  // Predicated region
  $region14: #{btnn_forward.1} parent=0 // pred_check
    %p15 = pneg %p14
  $region15: #{btnn_forward.1} parent=0 // pred_check_branch
    %17 = sbr.rel (%p15) target = $region17
  $region16: #{btnn_forward.1} parent=0 // pred_region
    %18 = vst [vmem:[#allocation2] sm:$0xff] 0.0
  $region17: #{btnn_forward.1} parent=0 // pred_fallthru
    _
  %v19 = vld [vmem:[%s1] sm:$0xff]
  %v20 = vld [vmem:[%s1 + $0x8] sm:$0xff]
  %v21 = vld [vmem:[%s1 + $0x10] sm:$0xff]
  %v22 = vld [vmem:[%s1 + $0x18] sm:$0xff]
  %v23 = vld [vmem:[%s1 + $0x20] sm:$0xff]
  %v24 = vld [vmem:[%s1 + $0x28] sm:$0xff]
  %v25 = vld [vmem:[%s1 + $0x30] sm:$0xff]
  %v26 = vld [vmem:[%s1 + $0x38] sm:$0xff]
  %v27 = vld [vmem:[%s1 + $0x40] sm:$0xff]
  %v28 = vld [vmem:[%s1 + $0x48] sm:$0xff]
  %v29 = vld [vmem:[%s1 + $0x50] sm:$0xff]
  %v30 = vld [vmem:[%s1 + $0x58] sm:$0xff]
  %v31 = vld [vmem:[%s1 + $0x60] sm:$0xff]
  %v32 = vld [vmem:[%s1 + $0x68] sm:$0xff]
  %v33 = vld [vmem:[%s1 + $0x70] sm:$0xff]
  %v34 = vld [vmem:[%s1 + $0x78] sm:$0xff]
  %vm35 = vcmp.gt.f32.partialorder %v19, 0.0
  %vm36 = vcmp.gt.f32.partialorder %v20, 0.0
  %vm37 = vcmp.gt.f32.partialorder %v21, 0.0
  %vm38 = vcmp.gt.f32.partialorder %v22, 0.0
  %vm39 = vcmp.gt.f32.partialorder %v23, 0.0
  %vm40 = vcmp.gt.f32.partialorder %v24, 0.0
  %vm41 = vcmp.gt.f32.partialorder %v25, 0.0
  %vm42 = vcmp.gt.f32.partialorder %v26, 0.0
  %vm43 = vcmp.gt.f32.partialorder %v27, 0.0
  %vm44 = vcmp.gt.f32.partialorder %v28, 0.0
  %vm45 = vcmp.gt.f32.partialorder %v29, 0.0
  %vm46 = vcmp.gt.f32.partialorder %v30, 0.0
  %vm47 = vcmp.gt.f32.partialorder %v31, 0.0
  %vm48 = vcmp.gt.f32.partialorder %v32, 0.0
  %vm49 = vcmp.gt.f32.partialorder %v33, 0.0
  %vm50 = vcmp.gt.f32.partialorder %v34, 0.0
  %v51 = vsel %vm35, 1, 0
  %v52 = vsel %vm36, 1, 0
  %v53 = vsel %vm37, 1, 0
  %v54 = vsel %vm38, 1, 0
  %v55 = vsel %vm39, 1, 0
  %v56 = vsel %vm40, 1, 0
  %v57 = vsel %vm41, 1, 0
  %v58 = vsel %vm42, 1, 0
  %v59 = vsel %vm43, 1, 0
  %v60 = vsel %vm44, 1, 0
  %v61 = vsel %vm45, 1, 0
  %v62 = vsel %vm46, 1, 0
  %v63 = vsel %vm47, 1, 0
  %v64 = vsel %vm48, 1, 0
  %v65 = vsel %vm49, 1, 0
  %v66 = vsel %vm50, 1, 0
  %v67 = vcvt.s32.f32 %v51
  %v68 = vcvt.s32.f32 %v52
  %v69 = vcvt.s32.f32 %v53
  %v70 = vcvt.s32.f32 %v54
  %v71 = vcvt.s32.f32 %v55
  %v72 = vcvt.s32.f32 %v56
  %v73 = vcvt.s32.f32 %v57
  %v74 = vcvt.s32.f32 %v58
  %v75 = vcvt.s32.f32 %v59
  %v76 = vcvt.s32.f32 %v60
  %v77 = vcvt.s32.f32 %v61
  %v78 = vcvt.s32.f32 %v62
  %v79 = vcvt.s32.f32 %v63
  %v80 = vcvt.s32.f32 %v64
  %v81 = vcvt.s32.f32 %v65
  %v82 = vcvt.s32.f32 %v66
  %v83 = vld [vmem:[%s2] sm:$0xff]
  %v84 = vld [vmem:[%s2 + $0x8] sm:$0xff]
  %v85 = vld [vmem:[%s2 + $0x10] sm:$0xff]
  %v86 = vld [vmem:[%s2 + $0x18] sm:$0xff]
  %v87 = vld [vmem:[%s2 + $0x20] sm:$0xff]
  %v88 = vld [vmem:[%s2 + $0x28] sm:$0xff]
  %v89 = vld [vmem:[%s2 + $0x30] sm:$0xff]
  %v90 = vld [vmem:[%s2 + $0x38] sm:$0xff]
  %v91 = vld [vmem:[%s2 + $0x40] sm:$0xff]
  %v92 = vld [vmem:[%s2 + $0x48] sm:$0xff]
  %v93 = vld [vmem:[%s2 + $0x50] sm:$0xff]
  %v94 = vld [vmem:[%s2 + $0x58] sm:$0xff]
  %v95 = vld [vmem:[%s2 + $0x60] sm:$0xff]
  %v96 = vld [vmem:[%s2 + $0x68] sm:$0xff]
  %v97 = vld [vmem:[%s2 + $0x70] sm:$0xff]
  %v98 = vld [vmem:[%s2 + $0x78] sm:$0xff]
  %vm99 = vcmp.gt.f32.partialorder %v83, 0.0
  %vm100 = vcmp.gt.f32.partialorder %v84, 0.0
  %vm101 = vcmp.gt.f32.partialorder %v85, 0.0
  %vm102 = vcmp.gt.f32.partialorder %v86, 0.0
  %vm103 = vcmp.gt.f32.partialorder %v87, 0.0
  %vm104 = vcmp.gt.f32.partialorder %v88, 0.0
  %vm105 = vcmp.gt.f32.partialorder %v89, 0.0
  %vm106 = vcmp.gt.f32.partialorder %v90, 0.0
  %vm107 = vcmp.gt.f32.partialorder %v91, 0.0
  %vm108 = vcmp.gt.f32.partialorder %v92, 0.0
  %vm109 = vcmp.gt.f32.partialorder %v93, 0.0
  %vm110 = vcmp.gt.f32.partialorder %v94, 0.0
  %vm111 = vcmp.gt.f32.partialorder %v95, 0.0
  %vm112 = vcmp.gt.f32.partialorder %v96, 0.0
  %vm113 = vcmp.gt.f32.partialorder %v97, 0.0
  %vm114 = vcmp.gt.f32.partialorder %v98, 0.0
  %v115 = vsel %vm99, 1, 0
  %v116 = vsel %vm100, 1, 0
  %v117 = vsel %vm101, 1, 0
  %v118 = vsel %vm102, 1, 0
  %v119 = vsel %vm103, 1, 0
  %v120 = vsel %vm104, 1, 0
  %v121 = vsel %vm105, 1, 0
  %v122 = vsel %vm106, 1, 0
  %v123 = vsel %vm107, 1, 0
  %v124 = vsel %vm108, 1, 0
  %v125 = vsel %vm109, 1, 0
  %v126 = vsel %vm110, 1, 0
  %v127 = vsel %vm111, 1, 0
  %v128 = vsel %vm112, 1, 0
  %v129 = vsel %vm113, 1, 0
  %v130 = vsel %vm114, 1, 0
  %v131 = vcvt.s32.f32 %v115
  %v132 = vcvt.s32.f32 %v116
  %v133 = vcvt.s32.f32 %v117
  %v134 = vcvt.s32.f32 %v118
  %v135 = vcvt.s32.f32 %v119
  %v136 = vcvt.s32.f32 %v120
  %v137 = vcvt.s32.f32 %v121
  %v138 = vcvt.s32.f32 %v122
  %v139 = vcvt.s32.f32 %v123
  %v140 = vcvt.s32.f32 %v124
  %v141 = vcvt.s32.f32 %v125
  %v142 = vcvt.s32.f32 %v126
  %v143 = vcvt.s32.f32 %v127
  %v144 = vcvt.s32.f32 %v128
  %v145 = vcvt.s32.f32 %v129
  %v146 = vcvt.s32.f32 %v130
  %v147 = vsub.f32 %v67, %v131
  %v148 = vsub.f32 %v68, %v132
  %v149 = vsub.f32 %v69, %v133
  %v150 = vsub.f32 %v70, %v134
  %v151 = vsub.f32 %v71, %v135
  %v152 = vsub.f32 %v72, %v136
  %v153 = vsub.f32 %v73, %v137
  %v154 = vsub.f32 %v74, %v138
  %v155 = vsub.f32 %v75, %v139
  %v156 = vsub.f32 %v76, %v140
  %v157 = vsub.f32 %v77, %v141
  %v158 = vsub.f32 %v78, %v142
  %v159 = vsub.f32 %v79, %v143
  %v160 = vsub.f32 %v80, %v144
  %v161 = vsub.f32 %v81, %v145
  %v162 = vsub.f32 %v82, %v146
  %v163 = vld [vmem:[#allocation2] sm:$0xff]
  %v164 = vld [vmem:[%s0] sm:$0xff]
  %165 = vmatprep.subr.mxu0 0.0
  %166 = vmatpush1.xpose.msra.mxu0 %v162
  %167 = vmatprep.subr.mxu0 0.0
  %168 = vmatpush1.xpose.msra.mxu0 %v161
  %169 = vmatprep.subr.mxu0 0.0
  %170 = vmatpush1.xpose.msra.mxu0 %v160
  %171 = vmatprep.subr.mxu0 0.0
  %172 = vmatpush1.xpose.msra.mxu0 %v159
  %173 = vmatprep.subr.mxu0 0.0
  %174 = vmatpush1.xpose.msra.mxu0 %v158
  %175 = vmatprep.subr.mxu0 0.0
  %176 = vmatpush1.xpose.msra.mxu0 %v157
  %177 = vmatprep.subr.mxu0 0.0
  %178 = vmatpush1.xpose.msra.mxu0 %v156
  %179 = vmatprep.subr.mxu0 0.0
  %180 = vmatpush1.xpose.msra.mxu0 %v155
  %181 = vmatprep.subr.mxu0 0.0
  %182 = vmatpush1.xpose.msra.mxu0 %v154
  %183 = vmatprep.subr.mxu0 0.0
  %184 = vmatpush1.xpose.msra.mxu0 %v153
  %185 = vmatprep.subr.mxu0 0.0
  %186 = vmatpush1.xpose.msra.mxu0 %v152
  %187 = vmatprep.subr.mxu0 0.0
  %188 = vmatpush1.xpose.msra.mxu0 %v151
  %189 = vmatprep.subr.mxu0 0.0
  %190 = vmatpush1.xpose.msra.mxu0 %v150
  %191 = vmatprep.subr.mxu0 0.0
  %192 = vmatpush1.xpose.msra.mxu0 %v149
  %193 = vmatprep.subr.mxu0 0.0
  %194 = vmatpush1.xpose.msra.mxu0 %v148
  %195 = vmatprep.subr.mxu0 0.0
  %196 = vmatpush1.xpose.msra.mxu0 %v147
  %197 = vmatprep.subr.mxu0 0.0
  %198 = vmatpush2.xpose.msra.mxu0 0.0
  %199 = vmatprep.subr.mxu0 0.0
  %200 = vmatpush2.xpose.msra.mxu0 0.0
  %201 = vmatprep.subr.mxu0 0.0
  %202 = vmatpush2.xpose.msra.mxu0 0.0
  %203 = vmatprep.subr.mxu0 0.0
  %204 = vmatpush2.xpose.msra.mxu0 0.0
  %205 = vmatprep.subr.mxu0 0.0
  %206 = vmatpush2.xpose.msra.mxu0 0.0
  %207 = vmatprep.subr.mxu0 0.0
  %208 = vmatpush2.xpose.msra.mxu0 0.0
  %209 = vmatprep.subr.mxu0 0.0
  %210 = vmatpush2.xpose.msra.mxu0 0.0
  %211 = vmatprep.subr.mxu0 0.0
  %212 = vmatpush2.xpose.msra.mxu0 0.0
  %213 = vmatprep.subr.mxu0 0.0
  %214 = vmatpush2.xpose.msra.mxu0 0.0
  %215 = vmatprep.subr.mxu0 0.0
  %216 = vmatpush2.xpose.msra.mxu0 0.0
  %217 = vmatprep.subr.mxu0 0.0
  %218 = vmatpush2.xpose.msra.mxu0 0.0
  %219 = vmatprep.subr.mxu0 0.0
  %220 = vmatpush2.xpose.msra.mxu0 0.0
  %221 = vmatprep.subr.mxu0 0.0
  %222 = vmatpush2.xpose.msra.mxu0 0.0
  %223 = vmatprep.subr.mxu0 0.0
  %224 = vmatpush2.xpose.msra.mxu0 0.0
  %225 = vmatprep.subr.mxu0 0.0
  %226 = vmatpush2.xpose.msra.mxu0 0.0
  %227 = vmatprep.subr.mxu0 0.0
  %228 = vmatpush2.xpose.msra.mxu0 0.0
  %229 = vmatprep.mubr.f32.mxu0 0.0
  %230 = vmatmul.mubr.f32.gmra.mxu0 %v164
  %v231 = vpop.f32.mrf.mxu0
  %v232 = vadd.f32 0.0, %v231
  %v233 = vpop.f32.mrf.mxu0
  %234 = vdwg.mxu0
  %v235 = vadd.f32 %v163, %v232
  %236 = vst [vmem:[#allocation2] sm:$0xff] %v235
  // Predicated region
  $region18: #{btnn_forward.1} parent=0 // pred_check
    %p237 = pneg %p14
  $region19: #{btnn_forward.1} parent=0 // pred_check_branch
    %239 = sbr.rel (%p237) target = $region21
  $region20: #{btnn_forward.1} parent=0 // pred_region
    %v240 = vld [vmem:[#allocation2] sm:$0xff]
    %vm241 = vcmp.gt.f32.partialorder %v240, 0.0
    %v242 = vsel %vm241, 1, 0
    %v243 = vcvt.s32.f32 %v242
    %244 = vst [vmem:[%s3] sm:$0xff] %v243
  $region21: #{btnn_forward.1} parent=0 // pred_fallthru
    _
  // Predicated region
  $region22: #{btnn_forward.1} parent=0 // pred_check
    _
  $region23: #{btnn_forward.1} parent=0 // pred_check_branch
    %246 = sbr.rel (0) target = $region25
  $region24: #{btnn_forward.1} parent=0 // pred_region
    _
  $region25: #{btnn_forward.1} parent=0 // pred_fallthru
    _
  // Predicated region
  $region26: #{btnn_forward.1} parent=0 // pred_check
    _
  $region27: #{btnn_forward.1} parent=0 // pred_check_branch
    %248 = sbr.rel (0) target = $region29
  $region28: #{btnn_forward.1} parent=0 // pred_region
    _
  $region29: #{btnn_forward.1} parent=0 // pred_fallthru
    _

</llo_original>
